<compile_context>
chip_gen: v5e
topology: v5e:2x2
jax: 0.10.0
libtpu: 0.0.40
codegen_flags: <defaults>
</compile_context>

<pallas_src>
import functools

import jax
import jax.numpy as jnp
from jax.experimental import pallas as pl
from jax.experimental.pallas import tpu as pltpu

IN_FEATURES = 784
H1, H2, OUT_FEATURES = 256, 128, 10
OUT_PAD = 128                          # lane-dense padded output width

FP8_MAX = 240.0                        # E4M3-style max used by the reference
FP8_MIN_NORMAL = 0.00390625            # 2^-8
_MIN_NORMAL_BITS = 0x3B800000          # f32 bit pattern of 2^-8
_MANT_BITS = 3                         # keep 3 of f32's 23 mantissa bits
_KEEP = 23 - _MANT_BITS                # 20 dropped bits
_RBIAS = (1 << (_KEEP - 1)) - 1        # round-to-nearest-even bias
_MANT_MASK = 0xFFFFFFFF & ~((1 << _KEEP) - 1)

_MAX_TILE_ROWS = 1024                  # ~3 MiB x-tile; fits every gen's scoped VMEM
_MIN_SPLIT_ROWS = 256                  # don't shrink tiles below this for extra steps


def _round_up(a, m):
    return ((a + m - 1) // m) * m


def _host_bitcast(v, dt):
    return jax.lax.bitcast_convert_type(v, dt)


def _rne_quant(v, bitcast):
    """Round v (already scaled) onto the emulated-fp8 (E4M3, max=240) grid.

    clamp to +-240, round-to-nearest-even at 3 mantissa bits, flush |v|<2^-8.
    Pure VALU integer work on the signed bit pattern: the clamp guarantees the
    rounding carry can never reach the sign bit, so no sign/abs/sign-multiply.
    Returns f32 values that fit exactly in bf16 (<=4 significant bits).
    """
    ts = jnp.clip(v.astype(jnp.float32), -FP8_MAX, FP8_MAX)
    bits = bitcast(ts, jnp.uint32)
    mag = bits & jnp.uint32(0x7FFFFFFF)                 # magnitude bits
    tie = (bits >> jnp.uint32(_KEEP)) & jnp.uint32(1)   # LSB of kept mantissa
    rbits = (bits + tie + jnp.uint32(_RBIAS)) & jnp.uint32(_MANT_MASK)
    q = bitcast(rbits, jnp.float32)
    return jnp.where(mag < jnp.uint32(_MIN_NORMAL_BITS), 0.0, q)


def _calib_scale(t):
    """Per-tensor scale/inverse-scale matching the reference calibration."""
    abs_max = jnp.max(jnp.abs(t)).astype(jnp.float32)
    scale = jnp.where(abs_max > 0.0, FP8_MAX / abs_max, 1.0).astype(jnp.float32)
    inv = jnp.where(abs_max > 0.0, abs_max * (1.0 / FP8_MAX), 1.0).astype(jnp.float32)
    return scale, inv


def host_quant_fp8(t, use_calibration=False):
    """Full fake-quant round trip (reference semantics), out-of-kernel."""
    t = jnp.asarray(t, jnp.float32)
    if use_calibration:
        scale, inv = _calib_scale(t)
    else:
        scale, inv = jnp.float32(1.0), jnp.float32(1.0)
    return _rne_quant(t * scale, _host_bitcast) * inv


def mlp_kernel(scales_ref, x_ref, w1_ref, b1_ref, w2_ref, b2_ref, w3_ref,
               b3_ref, o_ref, *, use_fp8):
    """One batch tile of the 3-layer MLP, fully resident in VMEM.

    Weights arrive already cast (bf16) / fake-quantized to the fp8 grid
    (hoisted to prepare_params).  On the fp8 path the MXU sees bf16 carriers
    of the scaled-quantized values; the per-tensor de-scales (scales_ref) are
    applied to the f32 accumulator after each dot.
    """
    if use_fp8:
        s = scales_ref[...].astype(jnp.float32)          # (1, 8), resident
        s_x, dq1 = s[:, 0:1], s[:, 1:2]
        s_h1, dq2 = s[:, 2:3], s[:, 3:4]
        s_h2, dq3 = s[:, 4:5], s[:, 5:6]

        q = _rne_quant(x_ref[...] * s_x, pltpu.bitcast).astype(jnp.bfloat16)
        h = jnp.dot(q, w1_ref[...],
                    preferred_element_type=jnp.float32) * dq1 + b1_ref[...]
        h = jnp.maximum(h, 0.0)

        q = _rne_quant(h * s_h1, pltpu.bitcast).astype(jnp.bfloat16)
        h = jnp.dot(q, w2_ref[...],
                    preferred_element_type=jnp.float32) * dq2 + b2_ref[...]
        h = jnp.maximum(h, 0.0)

        q = _rne_quant(h * s_h2, pltpu.bitcast).astype(jnp.bfloat16)
        o_ref[...] = (jnp.dot(q, w3_ref[...],
                              preferred_element_type=jnp.float32) * dq3
                      + b3_ref[...])
    else:
        # x arrives bf16 (cast hoisted to the wrapper); accumulate in f32.
        h = jnp.dot(x_ref[...], w1_ref[...],
                    preferred_element_type=jnp.float32) + b1_ref[...]
        h = jnp.maximum(h, 0.0)
        h = jnp.dot(h.astype(w2_ref.dtype), w2_ref[...],
                    preferred_element_type=jnp.float32) + b2_ref[...]
        h = jnp.maximum(h, 0.0)
        o_ref[...] = jnp.dot(h.astype(w3_ref.dtype), w3_ref[...],
                             preferred_element_type=jnp.float32) + b3_ref[...]


def prepare_params(params, use_fp8=False, use_calibration=False,
                   weight_dtype=jnp.bfloat16):
    """Hoisted, call-once preprocessing of the constant weights.

    * fp8 path: weights fake-quantized here; the *scaled* fp8-grid values are
      stored as bf16 (exact) plus their per-tensor inverse scales.
    * normal path: weights stored/streamed as bf16; MXU accumulates in f32.
    * fc3/bias zero-padded to a lane-dense 128-wide output block.
    """
    w1, b1, w2, b2, w3, b3 = [jnp.asarray(p, jnp.float32) for p in params]
    if use_fp8:
        # TODO(synk): on v7x feed native float8_e4m3 MXU operands; bf16
        # carriers of the exact fp8-grid values are kept for portability
        # (v5e/v6e have no fp8 MXU path).
        def prep_w(w):
            if use_calibration:
                s, inv = _calib_scale(w)
            else:
                s, inv = jnp.float32(1.0), jnp.float32(1.0)
            return _rne_quant(w * s, _host_bitcast).astype(jnp.bfloat16), inv

        w1, i1 = prep_w(w1)
        w2, i2 = prep_w(w2)
        w3, i3 = prep_w(w3)
        inv_w = jnp.stack([i1, i2, i3]).astype(jnp.float32)
    else:
        w1 = w1.astype(weight_dtype)
        w2 = w2.astype(weight_dtype)
        w3 = w3.astype(weight_dtype)
        inv_w = jnp.ones((3,), jnp.float32)
    w3p = jnp.zeros((H2, OUT_PAD), w3.dtype).at[:, :OUT_FEATURES].set(w3)
    b3p = jnp.zeros((1, OUT_PAD), jnp.float32).at[:, :OUT_FEATURES].set(b3)
    return {"w1": w1, "b1": b1, "w2": w2, "b2": b2, "w3": w3p, "b3": b3p,
            "inv_w": inv_w}


def simple_nn_forward(x, prep, use_fp8=False, use_calibration=False):
    """Pallas wrapper. Accepts any x that flattens to (-1, 784)."""
    w1, b1 = prep["w1"], prep["b1"]
    w2, b2 = prep["w2"], prep["b2"]
    w3p, b3p = prep["w3"], prep["b3"]

    x2 = jnp.asarray(x, jnp.float32).reshape(-1, IN_FEATURES)
    b = x2.shape[0]

    one = jnp.float32(1.0)
    if use_fp8:
        inv_w = prep["inv_w"].astype(jnp.float32)
        if use_calibration:
            # Two-pass calibration: plain-JAX pre-pass mirrors the reference
            # forward to get whole-batch per-tensor abs-max scales.  Keeps the
            # Pallas kernel tiled/pipelined/VMEM-bounded for any batch size
            # (the old single-tile path blew past scoped VMEM at large B).
            w1d = w1.astype(jnp.float32) * inv_w[0]
            w2d = w2.astype(jnp.float32) * inv_w[1]
            s_x, i_x = _calib_scale(x2)
            h = _rne_quant(x2 * s_x, _host_bitcast) * i_x
            h = jnp.maximum(
                jnp.dot(h, w1d, preferred_element_type=jnp.float32) + b1, 0.0)
            s_1, i_1 = _calib_scale(h)
            h = _rne_quant(h * s_1, _host_bitcast) * i_1
            h = jnp.maximum(
                jnp.dot(h, w2d, preferred_element_type=jnp.float32) + b2, 0.0)
            s_2, i_2 = _calib_scale(h)
        else:
            s_x = s_1 = s_2 = i_x = i_1 = i_2 = one
        scales = jnp.stack([s_x, i_x * inv_w[0], s_1, i_1 * inv_w[1],
                            s_2, i_2 * inv_w[2], one, one]).reshape(1, 8)
        scales = scales.astype(jnp.float32)
    else:
        scales = jnp.ones((1, 8), jnp.float32)
        # bf16 x halves the dominant HBM stream; under jit the cast fuses with
        # the pad/reshape copy below.
        x2 = x2.astype(w1.dtype)

    # Batch tiling: biggest tile that amortises per-step overhead (<=1024
    # rows), but force >=2 grid steps once the batch is big enough so the
    # ("parallel",) axis can shard across both v7x TensorCores.
    b_pad = _round_up(b, 8)
    n_tiles = max(1, -(-b_pad // _MAX_TILE_ROWS))
    if n_tiles == 1 and b_pad >= 2 * _MIN_SPLIT_ROWS:
        n_tiles = 2
    tb = _round_up(-(-b_pad // n_tiles), 16) if n_tiles > 1 else b_pad
    b_pad = n_tiles * tb
    if b_pad != b:
        x2 = jnp.pad(x2, ((0, b_pad - b), (0, 0)))

    kernel = functools.partial(mlp_kernel, use_fp8=use_fp8)

    def resident(arr):
        # Full-extent block, constant index map -> stays in VMEM across steps.
        # (pipeline_mode=pl.Buffered(1) could shave the second buffer on v7x.)
        return pl.BlockSpec(arr.shape, lambda i, n=arr.ndim: (0,) * n)

    out = pl.pallas_call(
        kernel,
        out_shape=jax.ShapeDtypeStruct((b_pad, OUT_PAD), jnp.float32),
        grid=(n_tiles,),
        in_specs=[
            resident(scales),
            pl.BlockSpec((tb, IN_FEATURES), lambda i: (i, 0)),
            resident(w1), resident(b1),
            resident(w2), resident(b2),
            resident(w3p), resident(b3p),
        ],
        out_specs=pl.BlockSpec((tb, OUT_PAD), lambda i: (i, 0)),
        compiler_params=pltpu.CompilerParams(
            dimension_semantics=("parallel",)),   # batch tiles are independent
    )(scales, x2, w1, b1, w2, b2, w3p, b3p)
    return out[:b, :OUT_FEATURES]


def make_params(key):
    """Deterministic init mimicking PyTorch Linear default U(-1/sqrt(fan_in), ...)."""
    def linear(k, fan_in, fan_out):
        kw, kb = jax.random.split(k)
        bound = 1.0 / jnp.sqrt(jnp.float32(fan_in))
        w = jax.random.uniform(kw, (fan_in, fan_out), jnp.float32, -bound, bound)
        bias = jax.random.uniform(kb, (1, fan_out), jnp.float32, -bound, bound)
        return w, bias

    k1, k2, k3 = jax.random.split(key, 3)
    w1, b1 = linear(k1, IN_FEATURES, H1)
    w2, b2 = linear(k2, H1, H2)
    w3, b3 = linear(k3, H2, OUT_FEATURES)
    return (w1, b1, w2, b2, w3, b3)


def ref_forward(x, params, use_fp8=False, use_calibration=False,
                weight_dtype=jnp.float32):
    """Pure-JAX reference mirroring the PyTorch forward."""
    w1, b1, w2, b2, w3, b3 = [jnp.asarray(p, jnp.float32) for p in params]
    if use_fp8:
        w1 = host_quant_fp8(w1, use_calibration)
        w2 = host_quant_fp8(w2, use_calibration)
        w3 = host_quant_fp8(w3, use_calibration)
        cdt = jnp.float32
    else:
        cdt = weight_dtype

    def lin(a, w, bias):
        return jnp.dot(a.astype(cdt), w.astype(cdt),
                       preferred_element_type=jnp.float32) + bias

    h = jnp.asarray(x, jnp.float32).reshape(-1, IN_FEATURES)
    if use_fp8:
        h = host_quant_fp8(h, use_calibration)
    h = jnp.maximum(lin(h, w1, b1), 0.0)
    if use_fp8:
        h = host_quant_fp8(h, use_calibration)
    h = jnp.maximum(lin(h, w2, b2), 0.0)
    if use_fp8:
        h = host_quant_fp8(h, use_calibration)
    return lin(h, w3, b3)


if __name__ == "__main__":
    key = jax.random.PRNGKey(0)
    kx, kp = jax.random.split(key)

    # MNIST-like NCHW input: (batch=8, 1, 28, 28) -> flattened to (8, 784)
    x = jax.random.normal(kx, (8, 1, 28, 28), dtype=jnp.float32)
    params = make_params(kp)

    # Deterministic unit check of the signed-bit RNE fp8 quantizer.
    t = jnp.array([0.3, 1.0, 239.0, 0.001, -0.17], jnp.float32)
    q = host_quant_fp8(t, use_calibration=False)
    expected = jnp.array([0.3125, 1.0, 240.0, 0.0, -0.171875], jnp.float32)
    assert bool(jnp.all(q == expected)), (q, expected)

    fwd = jax.jit(simple_nn_forward,
                  static_argnames=("use_fp8", "use_calibration"))

    # Default path: bf16 weights + bf16 x (hoisted casts), f32 accumulation.
    prep = prepare_params(params)                        # call once, reuse
    out = jax.block_until_ready(fwd(x, prep))
    assert out.shape == (8, 10) and out.dtype == jnp.float32
    ref_bf16 = ref_forward(x, params, weight_dtype=jnp.bfloat16)
    assert jnp.allclose(out, ref_bf16, atol=1e-3, rtol=1e-3)
    ref_f32 = ref_forward(x, params, weight_dtype=jnp.float32)
    assert jnp.allclose(out, ref_f32, atol=5e-2, rtol=5e-2)

    # fp8 path, no calibration: bf16 carriers of fp8-grid values on the MXU.
    prep8n = prepare_params(params, use_fp8=True, use_calibration=False)
    out8n = jax.block_until_ready(fwd(x, prep8n, use_fp8=True))
    ref8n = ref_forward(x, params, use_fp8=True, use_calibration=False)
    assert out8n.shape == (8, 10)
    assert jnp.allclose(out8n, ref8n, atol=5e-2, rtol=5e-2)

    # fp8 + calibration: per-tensor scales from the pre-pass, tiled kernel,
    # post-matmul de-scale on the f32 accumulator.
    prep8 = prepare_params(params, use_fp8=True, use_calibration=True)
    out8 = jax.block_until_ready(
        fwd(x, prep8, use_fp8=True, use_calibration=True))
    assert out8.shape == (8, 10)
    ref8 = ref_forward(x, params, use_fp8=True, use_calibration=True)
    assert jnp.allclose(out8, ref8, atol=5e-2, rtol=5e-2)

    print("KERNEL_OK")
</pallas_src>

<mosaic_0001>
module attributes {stable_mosaic.version = 11 : i64} {
  func.func @mlp_kernel(%arg0: i32, %arg1: memref<1x8xf32, #tpu.memory_space<vmem>>, %arg2: memref<8x784xbf16, #tpu.memory_space<vmem>>, %arg3: memref<784x256xbf16, #tpu.memory_space<vmem>>, %arg4: memref<1x256xf32, #tpu.memory_space<vmem>>, %arg5: memref<256x128xbf16, #tpu.memory_space<vmem>>, %arg6: memref<1x128xf32, #tpu.memory_space<vmem>>, %arg7: memref<128x128xbf16, #tpu.memory_space<vmem>>, %arg8: memref<1x128xf32, #tpu.memory_space<vmem>>, %arg9: memref<8x128xf32, #tpu.memory_space<vmem>>) attributes {dimension_semantics = [#tpu.dimension_semantics<parallel>], iteration_bounds = array<i64: 1>, scalar_prefetch = 0 : i64, scratch_operands = 0 : i64, tpu.core_type = #tpu.core_type<tc>, window_params = [{pipeline_mode = #tpu.pipeline_mode<synchronous>, transform_indices = @transform_0, window_bounds = array<i64: 1, 8>}, {transform_indices = @transform_1, window_bounds = array<i64: 8, 784>}, {pipeline_mode = #tpu.pipeline_mode<synchronous>, transform_indices = @transform_2, window_bounds = array<i64: 784, 256>}, {pipeline_mode = #tpu.pipeline_mode<synchronous>, transform_indices = @transform_3, window_bounds = array<i64: 1, 256>}, {pipeline_mode = #tpu.pipeline_mode<synchronous>, transform_indices = @transform_4, window_bounds = array<i64: 256, 128>}, {pipeline_mode = #tpu.pipeline_mode<synchronous>, transform_indices = @transform_5, window_bounds = array<i64: 1, 128>}, {pipeline_mode = #tpu.pipeline_mode<synchronous>, transform_indices = @transform_6, window_bounds = array<i64: 128, 128>}, {pipeline_mode = #tpu.pipeline_mode<synchronous>, transform_indices = @transform_7, window_bounds = array<i64: 1, 128>}, {transform_indices = @transform_8, window_bounds = array<i64: 8, 128>}]} {
    %c0 = arith.constant 0 : index
    %c0_0 = arith.constant 0 : index
    %0 = vector.load %arg2[%c0, %c0_0] : memref<8x784xbf16, #tpu.memory_space<vmem>>, vector<8x784xbf16>
    %c0_1 = arith.constant 0 : index
    %c0_2 = arith.constant 0 : index
    %1 = vector.load %arg3[%c0_1, %c0_2] : memref<784x256xbf16, #tpu.memory_space<vmem>>, vector<784x256xbf16>
    %cst = arith.constant dense<0.000000e+00> : vector<8x256xf32>
    %2 = tpu.matmul %0, %1, %cst {dimension_numbers = #tpu.dot_dimension_numbers<[1], [0], [0], [1], [0, 0, 1, 1], [], []>} : vector<8x784xbf16>, vector<784x256xbf16>, vector<8x256xf32> -> vector<8x256xf32>
    %c0_3 = arith.constant 0 : index
    %c0_4 = arith.constant 0 : index
    %3 = vector.load %arg4[%c0_3, %c0_4] : memref<1x256xf32, #tpu.memory_space<vmem>>, vector<1x256xf32>
    %4 = vector.broadcast %3 : vector<1x256xf32> to vector<8x256xf32>
    %5 = arith.addf %2, %4 : vector<8x256xf32>
    %cst_5 = arith.constant 0.000000e+00 : f32
    %6 = vector.broadcast %cst_5 : f32 to vector<8x256xf32>
    %7 = arith.maximumf %5, %6 : vector<8x256xf32>
    %8 = arith.truncf %7 : vector<8x256xf32> to vector<8x256xbf16>
    %c0_6 = arith.constant 0 : index
    %c0_7 = arith.constant 0 : index
    %9 = vector.load %arg5[%c0_6, %c0_7] : memref<256x128xbf16, #tpu.memory_space<vmem>>, vector<256x128xbf16>
    %cst_8 = arith.constant dense<0.000000e+00> : vector<8x128xf32>
    %10 = tpu.matmul %8, %9, %cst_8 {dimension_numbers = #tpu.dot_dimension_numbers<[1], [0], [0], [1], [0, 0, 1, 1], [], []>} : vector<8x256xbf16>, vector<256x128xbf16>, vector<8x128xf32> -> vector<8x128xf32>
    %c0_9 = arith.constant 0 : index
    %c0_10 = arith.constant 0 : index
    %11 = vector.load %arg6[%c0_9, %c0_10] : memref<1x128xf32, #tpu.memory_space<vmem>>, vector<1x128xf32>
    %12 = vector.broadcast %11 : vector<1x128xf32> to vector<8x128xf32>
    %13 = arith.addf %10, %12 : vector<8x128xf32>
    %cst_11 = arith.constant 0.000000e+00 : f32
    %14 = vector.broadcast %cst_11 : f32 to vector<8x128xf32>
    %15 = arith.maximumf %13, %14 : vector<8x128xf32>
    %16 = arith.truncf %15 : vector<8x128xf32> to vector<8x128xbf16>
    %c0_12 = arith.constant 0 : index
    %c0_13 = arith.constant 0 : index
    %17 = vector.load %arg7[%c0_12, %c0_13] : memref<128x128xbf16, #tpu.memory_space<vmem>>, vector<128x128xbf16>
    %cst_14 = arith.constant dense<0.000000e+00> : vector<8x128xf32>
    %18 = tpu.matmul %16, %17, %cst_14 {dimension_numbers = #tpu.dot_dimension_numbers<[1], [0], [0], [1], [0, 0, 1, 1], [], []>} : vector<8x128xbf16>, vector<128x128xbf16>, vector<8x128xf32> -> vector<8x128xf32>
    %c0_15 = arith.constant 0 : index
    %c0_16 = arith.constant 0 : index
    %19 = vector.load %arg8[%c0_15, %c0_16] : memref<1x128xf32, #tpu.memory_space<vmem>>, vector<1x128xf32>
    %20 = vector.broadcast %19 : vector<1x128xf32> to vector<8x128xf32>
    %21 = arith.addf %18, %20 : vector<8x128xf32>
    %c0_17 = arith.constant 0 : index
    %c0_18 = arith.constant 0 : index
    %22 = vector.load %arg9[%c0_17, %c0_18] : memref<8x128xf32, #tpu.memory_space<vmem>>, vector<8x128xf32>
    tpu.vector_store %arg9[%c0_17, %c0_18], %21 {strides = array<i32>} : memref<8x128xf32, #tpu.memory_space<vmem>>, vector<8x128xf32>,
    return
  }
  func.func @transform_0(%arg0: i32) -> (i32, i32) {
    %c0_i32 = arith.constant 0 : i32
    %c0_i32_0 = arith.constant 0 : i32
    %c0_i32_1 = arith.constant 0 : i32
    return %c0_i32, %c0_i32_0 : i32, i32
  }
  func.func @transform_1(%arg0: i32) -> (i32, i32) {
    %c0_i32 = arith.constant 0 : i32
    %c0_i32_0 = arith.constant 0 : i32
    return %arg0, %c0_i32 : i32, i32
  }
  func.func @transform_2(%arg0: i32) -> (i32, i32) {
    %c0_i32 = arith.constant 0 : i32
    %c0_i32_0 = arith.constant 0 : i32
    %c0_i32_1 = arith.constant 0 : i32
    return %c0_i32, %c0_i32_0 : i32, i32
  }
  func.func @transform_3(%arg0: i32) -> (i32, i32) {
    %c0_i32 = arith.constant 0 : i32
    %c0_i32_0 = arith.constant 0 : i32
    %c0_i32_1 = arith.constant 0 : i32
    return %c0_i32, %c0_i32_0 : i32, i32
  }
  func.func @transform_4(%arg0: i32) -> (i32, i32) {
    %c0_i32 = arith.constant 0 : i32
    %c0_i32_0 = arith.constant 0 : i32
    %c0_i32_1 = arith.constant 0 : i32
    return %c0_i32, %c0_i32_0 : i32, i32
  }
  func.func @transform_5(%arg0: i32) -> (i32, i32) {
    %c0_i32 = arith.constant 0 : i32
    %c0_i32_0 = arith.constant 0 : i32
    %c0_i32_1 = arith.constant 0 : i32
    return %c0_i32, %c0_i32_0 : i32, i32
  }
  func.func @transform_6(%arg0: i32) -> (i32, i32) {
    %c0_i32 = arith.constant 0 : i32
    %c0_i32_0 = arith.constant 0 : i32
    %c0_i32_1 = arith.constant 0 : i32
    return %c0_i32, %c0_i32_0 : i32, i32
  }
  func.func @transform_7(%arg0: i32) -> (i32, i32) {
    %c0_i32 = arith.constant 0 : i32
    %c0_i32_0 = arith.constant 0 : i32
    %c0_i32_1 = arith.constant 0 : i32
    return %c0_i32, %c0_i32_0 : i32, i32
  }
  func.func @transform_8(%arg0: i32) -> (i32, i32) {
    %c0_i32 = arith.constant 0 : i32
    %c0_i32_0 = arith.constant 0 : i32
    return %arg0, %c0_i32 : i32, i32
  }
}

</mosaic_0001>

<llo_original>
// kernel: simple_nn_forward.1
$region0: #{simple_nn_forward.1}
  #allocation0 [shape = 'u32[]', space=smem, size = 0x4, offset = 0x4, fixed_abs, tag = 'smem constant byte address 0x4 - core index']
  #allocation1 [shape = 'u32[72,128]{1,0:T(1,128)}', space=vmem, size = 0x9000, scoped, tag = 'internal scratch']
  %s0 = inlined_call_operand.vmem [shape: f32[1,8], index: 0, kind: input, shape index: {}]
  %s1 = inlined_call_operand.vmem [shape: bf16[8,784], index: 1, kind: input, shape index: {}]
  %s2 = inlined_call_operand.hbm [shape: bf16[784,256], index: 2, kind: input, shape index: {}]
  %s3 = inlined_call_operand.vmem [shape: f32[1,256], index: 3, kind: input, shape index: {}]
  %s4 = inlined_call_operand.vmem [shape: bf16[256,128], index: 4, kind: input, shape index: {}]
  %s5 = inlined_call_operand.vmem [shape: f32[1,128], index: 5, kind: input, shape index: {}]
  %s6 = inlined_call_operand.vmem [shape: bf16[128,128], index: 6, kind: input, shape index: {}]
  %s7 = inlined_call_operand.vmem [shape: f32[1,128], index: 7, kind: input, shape index: {}]
  %s8 = inlined_call_operand.hbm [shape: f32[8,128], index: 8, kind: output, shape index: {}]
  %s9 = sld [smem:[#allocation0]]
  $region46: #{simple_nn_forward.1} parent=0
    _
  %s11 = ssub.s32 1, %s9
  %s12 = scalar_select 0, %s11, %s9
  $region1: #{simple_nn_forward.1} parent=0
    #allocation2 [shape = 'u8[401408]{0}', space=vmem, size = 0x62000, scoped, tag = 'input window, operand 2, single buffered']
    #allocation3 [shape = 's32[1]{0}', space=sflag, size = 0x4, scoped, tag = 'scoped memory for simple_nn_forward.1']
    #allocation4 [shape = 's32[1]{0}', space=sflag, size = 0x4, scoped, tag = 'scoped memory for simple_nn_forward.1']
    #allocation5 [shape = 'u8[4096]{0}', space=vmem, size = 0x1000, scoped, tag = 'output window, operand 0, single buffered']
    %13 = vsyncpa [#allocation3], 0
    %14 = vsyncpa [#allocation4], 0
    // Predicated region
    $region2: #{simple_nn_forward.1} parent=1 // pred_check
      _
    $region3: #{simple_nn_forward.1} parent=1 // pred_check_branch
      %16 = sbr.rel (0) target = $region5
    $region4: #{simple_nn_forward.1} parent=1 // pred_region
      _
    $region5: #{simple_nn_forward.1} parent=1 // pred_fallthru
      _
    // Predicated region
    $region6: #{simple_nn_forward.1} parent=1 // pred_check
      _
    $region7: #{simple_nn_forward.1} parent=1 // pred_check_branch
      %18 = sbr.rel (0) target = $region9
    $region8: #{simple_nn_forward.1} parent=1 // pred_region
      _
    $region9: #{simple_nn_forward.1} parent=1 // pred_fallthru
      _
    // Predicated region
    $region10: #{simple_nn_forward.1} parent=1 // pred_check
      _
    $region11: #{simple_nn_forward.1} parent=1 // pred_check_branch
      %20 = sbr.rel (0) target = $region13
    $region12: #{simple_nn_forward.1} parent=1 // pred_region
      %22 = vsyncadd [#allocation3], 0
      %s23 = sshll.u32 %s2, 4
      %s24 = int_to_ptr.hbm [resolvable:$true] %s23
      %s25 = sshll.u32 [#allocation2], 4
      %s26 = int_to_ptr.vmem [resolvable:$true] %s25
      %31 = dma.hbm_to_vmem [thread:$0]  %s24, 12544, %s26, [#allocation3], 128, 128, 8
    $region13: #{simple_nn_forward.1} parent=1 // pred_fallthru
      _
    // Predicated region
    $region14: #{simple_nn_forward.1} parent=1 // pred_check
      _
    $region15: #{simple_nn_forward.1} parent=1 // pred_check_branch
      %33 = sbr.rel (0) target = $region17
    $region16: #{simple_nn_forward.1} parent=1 // pred_region
      _
    $region17: #{simple_nn_forward.1} parent=1 // pred_fallthru
      _
    // Predicated region
    $region18: #{simple_nn_forward.1} parent=1 // pred_check
      _
    $region19: #{simple_nn_forward.1} parent=1 // pred_check_branch
      %35 = sbr.rel (0) target = $region21
    $region20: #{simple_nn_forward.1} parent=1 // pred_region
      _
    $region21: #{simple_nn_forward.1} parent=1 // pred_fallthru
      _
    // Predicated region
    $region22: #{simple_nn_forward.1} parent=1 // pred_check
      _
    $region23: #{simple_nn_forward.1} parent=1 // pred_check_branch
      %37 = sbr.rel (0) target = $region25
    $region24: #{simple_nn_forward.1} parent=1 // pred_region
      _
    $region25: #{simple_nn_forward.1} parent=1 // pred_fallthru
      _
    // Predicated region
    $region26: #{simple_nn_forward.1} parent=1 // pred_check
      _
    $region27: #{simple_nn_forward.1} parent=1 // pred_check_branch
      %39 = sbr.rel (0) target = $region29
    $region28: #{simple_nn_forward.1} parent=1 // pred_region
      _
    $region29: #{simple_nn_forward.1} parent=1 // pred_fallthru
      _
    // Predicated region
    $region30: #{simple_nn_forward.1} parent=1 // pred_check
      _
    $region31: #{simple_nn_forward.1} parent=1 // pred_check_branch
      %41 = sbr.rel (0) target = $region33
    $region32: #{simple_nn_forward.1} parent=1 // pred_region
      _
    $region33: #{simple_nn_forward.1} parent=1 // pred_fallthru
      _
    // Predicated region
    $region34: #{simple_nn_forward.1} parent=1 // pred_check
      _
    $region35: #{simple_nn_forward.1} parent=1 // pred_check_branch
      %43 = sbr.rel (0) target = $region37
    $region36: #{simple_nn_forward.1} parent=1 // pred_region
      %45 = dma.done [#allocation3], 12544
    $region37: #{simple_nn_forward.1} parent=1 // pred_fallthru
      _
    %v47 = vld [vmem:[%s1] sm:$0xff]
    %v48 = vld [vmem:[%s1 + $0x8] sm:$0xff]
    %v49 = vld [vmem:[%s1 + $0x10] sm:$0xff]
    %v50 = vld [vmem:[%s1 + $0x18] sm:$0xf]
    %v51 = vld [vmem:[#allocation2] sm:$0xff]
    %v52 = vld [vmem:[#allocation2 + $0x8] sm:$0xff]
    %v53 = vld [vmem:[#allocation2 + $0x10] sm:$0xff]
    %v54 = vld [vmem:[#allocation2 + $0x18] sm:$0xff]
    %v55 = vld [vmem:[#allocation2 + $0x20] sm:$0xff]
    %v56 = vld [vmem:[#allocation2 + $0x28] sm:$0xff]
    %v57 = vld [vmem:[#allocation2 + $0x30] sm:$0xff]
    %v58 = vld [vmem:[#allocation2 + $0x38] sm:$0xff]
    %v59 = vld [vmem:[#allocation2 + $0x40] sm:$0xff]
    %v60 = vld [vmem:[#allocation2 + $0x48] sm:$0xff]
    %v61 = vld [vmem:[#allocation2 + $0x50] sm:$0xff]
    %v62 = vld [vmem:[#allocation2 + $0x58] sm:$0xff]
    %v63 = vld [vmem:[#allocation2 + $0x60] sm:$0xff]
    %v64 = vld [vmem:[#allocation2 + $0x68] sm:$0xff]
    %v65 = vld [vmem:[#allocation2 + $0x70] sm:$0xff]
    %v66 = vld [vmem:[#allocation2 + $0x78] sm:$0xff]
    %v67 = vld [vmem:[#allocation2 + $0x80] sm:$0xff]
    %v68 = vld [vmem:[#allocation2 + $0x88] sm:$0xff]
    %v69 = vld [vmem:[#allocation2 + $0x90] sm:$0xff]
    %v70 = vld [vmem:[#allocation2 + $0x98] sm:$0xff]
    %v71 = vld [vmem:[#allocation2 + $0xa0] sm:$0xff]
    %v72 = vld [vmem:[#allocation2 + $0xa8] sm:$0xff]
    %v73 = vld [vmem:[#allocation2 + $0xb0] sm:$0xff]
    %v74 = vld [vmem:[#allocation2 + $0xb8] sm:$0xff]
    %v75 = vld [vmem:[#allocation2 + $0xc0] sm:$0xff]
    %v76 = vld [vmem:[#allocation2 + $0xc8] sm:$0xff]
    %v77 = vld [vmem:[#allocation2 + $0xd0] sm:$0xff]
    %v78 = vld [vmem:[#allocation2 + $0xd8] sm:$0xff]
    %v79 = vld [vmem:[#allocation2 + $0xe0] sm:$0xff]
    %v80 = vld [vmem:[#allocation2 + $0xe8] sm:$0xff]
    %v81 = vld [vmem:[#allocation2 + $0xf0] sm:$0xff]
    %v82 = vld [vmem:[#allocation2 + $0xf8] sm:$0xff]
    %v83 = vld [vmem:[#allocation2 + $0x100] sm:$0xff]
    %v84 = vld [vmem:[#allocation2 + $0x108] sm:$0xff]
    %v85 = vld [vmem:[#allocation2 + $0x110] sm:$0xff]
    %v86 = vld [vmem:[#allocation2 + $0x118] sm:$0xff]
    %v87 = vld [vmem:[#allocation2 + $0x120] sm:$0xff]
    %v88 = vld [vmem:[#allocation2 + $0x128] sm:$0xff]
    %v89 = vld [vmem:[#allocation2 + $0x130] sm:$0xff]
    %v90 = vld [vmem:[#allocation2 + $0x138] sm:$0xff]
    %v91 = vld [vmem:[#allocation2 + $0x140] sm:$0xff]
    %v92 = vld [vmem:[#allocation2 + $0x148] sm:$0xff]
    %v93 = vld [vmem:[#allocation2 + $0x150] sm:$0xff]
    %v94 = vld [vmem:[#allocation2 + $0x158] sm:$0xff]
    %v95 = vld [vmem:[#allocation2 + $0x160] sm:$0xff]
    %v96 = vld [vmem:[#allocation2 + $0x168] sm:$0xff]
    %v97 = vld [vmem:[#allocation2 + $0x170] sm:$0xff]
    %v98 = vld [vmem:[#allocation2 + $0x178] sm:$0xff]
    %v99 = vld [vmem:[#allocation2 + $0x180] sm:$0xff]
    %v100 = vld [vmem:[#allocation2 + $0x188] sm:$0xff]
    %v101 = vld [vmem:[#allocation2 + $0x190] sm:$0xff]
    %v102 = vld [vmem:[#allocation2 + $0x198] sm:$0xff]
    %v103 = vld [vmem:[#allocation2 + $0x1a0] sm:$0xff]
    %v104 = vld [vmem:[#allocation2 + $0x1a8] sm:$0xff]
    %v105 = vld [vmem:[#allocation2 + $0x1b0] sm:$0xff]
    %v106 = vld [vmem:[#allocation2 + $0x1b8] sm:$0xff]
    %v107 = vld [vmem:[#allocation2 + $0x1c0] sm:$0xff]
    %v108 = vld [vmem:[#allocation2 + $0x1c8] sm:$0xff]
    %v109 = vld [vmem:[#allocation2 + $0x1d0] sm:$0xff]
    %v110 = vld [vmem:[#allocation2 + $0x1d8] sm:$0xff]
    %v111 = vld [vmem:[#allocation2 + $0x1e0] sm:$0xff]
    %v112 = vld [vmem:[#allocation2 + $0x1e8] sm:$0xff]
    %v113 = vld [vmem:[#allocation2 + $0x1f0] sm:$0xff]
    %v114 = vld [vmem:[#allocation2 + $0x1f8] sm:$0xff]
    %v115 = vld [vmem:[#allocation2 + $0x200] sm:$0xff]
    %v116 = vld [vmem:[#allocation2 + $0x208] sm:$0xff]
    %v117 = vld [vmem:[#allocation2 + $0x210] sm:$0xff]
    %v118 = vld [vmem:[#allocation2 + $0x218] sm:$0xff]
    %v119 = vld [vmem:[#allocation2 + $0x220] sm:$0xff]
    %v120 = vld [vmem:[#allocation2 + $0x228] sm:$0xff]
    %v121 = vld [vmem:[#allocation2 + $0x230] sm:$0xff]
    %v122 = vld [vmem:[#allocation2 + $0x238] sm:$0xff]
    %v123 = vld [vmem:[#allocation2 + $0x240] sm:$0xff]
    %v124 = vld [vmem:[#allocation2 + $0x248] sm:$0xff]
    %v125 = vld [vmem:[#allocation2 + $0x250] sm:$0xff]
    %v126 = vld [vmem:[#allocation2 + $0x258] sm:$0xff]
    %v127 = vld [vmem:[#allocation2 + $0x260] sm:$0xff]
    %v128 = vld [vmem:[#allocation2 + $0x268] sm:$0xff]
    %v129 = vld [vmem:[#allocation2 + $0x270] sm:$0xff]
    %v130 = vld [vmem:[#allocation2 + $0x278] sm:$0xff]
    %v131 = vld [vmem:[#allocation2 + $0x280] sm:$0xff]
    %v132 = vld [vmem:[#allocation2 + $0x288] sm:$0xff]
    %v133 = vld [vmem:[#allocation2 + $0x290] sm:$0xff]
    %v134 = vld [vmem:[#allocation2 + $0x298] sm:$0xff]
    %v135 = vld [vmem:[#allocation2 + $0x2a0] sm:$0xff]
    %v136 = vld [vmem:[#allocation2 + $0x2a8] sm:$0xff]
    %v137 = vld [vmem:[#allocation2 + $0x2b0] sm:$0xff]
    %v138 = vld [vmem:[#allocation2 + $0x2b8] sm:$0xff]
    %v139 = vld [vmem:[#allocation2 + $0x2c0] sm:$0xff]
    %v140 = vld [vmem:[#allocation2 + $0x2c8] sm:$0xff]
    %v141 = vld [vmem:[#allocation2 + $0x2d0] sm:$0xff]
    %v142 = vld [vmem:[#allocation2 + $0x2d8] sm:$0xff]
    %v143 = vld [vmem:[#allocation2 + $0x2e0] sm:$0xff]
    %v144 = vld [vmem:[#allocation2 + $0x2e8] sm:$0xff]
    %v145 = vld [vmem:[#allocation2 + $0x2f0] sm:$0xff]
    %v146 = vld [vmem:[#allocation2 + $0x2f8] sm:$0xff]
    %v147 = vld [vmem:[#allocation2 + $0x300] sm:$0xff]
    %v148 = vld [vmem:[#allocation2 + $0x308] sm:$0xff]
    %v149 = vld [vmem:[%s3] sm:$0x3]
    %v151 = vperm.slane %v149, 0
    %v152 = vperm.slane %v149, 1
    %v159 = vunpack.c.l.b16 %v47
    %v160 = vunpack.c.h.b16 %v47
    %v161 = vunpack.c.l.b16 %v48
    %v162 = vunpack.c.h.b16 %v48
    %v163 = vunpack.c.l.b16 %v49
    %v164 = vunpack.c.h.b16 %v49
    %v165 = vunpack.c.l.b16 %v50
    %v166 = vpack.c.b16 %v159, %v159
    %v167 = vpack.c.b16 %v160, %v160
    %v168 = vpack.c.b16 %v161, %v161
    %v169 = vpack.c.b16 %v162, %v162
    %v170 = vpack.c.b16 %v163, %v163
    %v171 = vpack.c.b16 %v164, %v164
    %v172 = vpack.c.b16 %v165, %v165
    %v277 = vunpack.c.l.b16 %v51
    %v278 = vunpack.c.h.b16 %v51
    %v279 = vunpack.c.l.b16 %v52
    %v280 = vunpack.c.h.b16 %v52
    %v281 = vunpack.c.l.b16 %v53
    %v282 = vunpack.c.h.b16 %v53
    %v283 = vunpack.c.l.b16 %v54
    %v284 = vunpack.c.h.b16 %v54
    %v285 = vunpack.c.l.b16 %v55
    %v286 = vunpack.c.h.b16 %v55
    %v287 = vunpack.c.l.b16 %v56
    %v288 = vunpack.c.h.b16 %v56
    %v289 = vunpack.c.l.b16 %v57
    %v290 = vunpack.c.h.b16 %v57
    %v291 = vunpack.c.l.b16 %v58
    %v292 = vunpack.c.h.b16 %v58
    %v293 = vunpack.c.l.b16 %v59
    %v294 = vunpack.c.h.b16 %v59
    %v295 = vunpack.c.l.b16 %v60
    %v296 = vunpack.c.h.b16 %v60
    %v297 = vunpack.c.l.b16 %v61
    %v298 = vunpack.c.h.b16 %v61
    %v299 = vunpack.c.l.b16 %v62
    %v300 = vunpack.c.h.b16 %v62
    %v301 = vunpack.c.l.b16 %v63
    %v302 = vunpack.c.h.b16 %v63
    %v303 = vunpack.c.l.b16 %v64
    %v304 = vunpack.c.h.b16 %v64
    %v305 = vunpack.c.l.b16 %v65
    %v306 = vunpack.c.h.b16 %v65
    %v307 = vunpack.c.l.b16 %v66
    %v308 = vunpack.c.h.b16 %v66
    %v309 = vunpack.c.l.b16 %v67
    %v310 = vunpack.c.h.b16 %v67
    %v311 = vunpack.c.l.b16 %v68
    %v312 = vunpack.c.h.b16 %v68
    %v313 = vunpack.c.l.b16 %v69
    %v314 = vunpack.c.h.b16 %v69
    %v315 = vunpack.c.l.b16 %v70
    %v316 = vunpack.c.h.b16 %v70
    %v317 = vunpack.c.l.b16 %v71
    %v318 = vunpack.c.h.b16 %v71
    %v319 = vunpack.c.l.b16 %v72
    %v320 = vunpack.c.h.b16 %v72
    %v321 = vunpack.c.l.b16 %v73
    %v322 = vunpack.c.h.b16 %v73
    %v323 = vunpack.c.l.b16 %v74
    %v324 = vunpack.c.h.b16 %v74
    %v325 = vunpack.c.l.b16 %v75
    %v326 = vunpack.c.h.b16 %v75
    %v327 = vunpack.c.l.b16 %v76
    %v328 = vunpack.c.h.b16 %v76
    %v329 = vunpack.c.l.b16 %v77
    %v330 = vunpack.c.h.b16 %v77
    %v331 = vunpack.c.l.b16 %v78
    %v332 = vunpack.c.h.b16 %v78
    %v333 = vunpack.c.l.b16 %v79
    %v334 = vunpack.c.h.b16 %v79
    %v335 = vunpack.c.l.b16 %v80
    %v336 = vunpack.c.h.b16 %v80
    %v337 = vunpack.c.l.b16 %v81
    %v338 = vunpack.c.h.b16 %v81
    %v339 = vunpack.c.l.b16 %v82
    %v340 = vunpack.c.h.b16 %v82
    %v341 = vunpack.c.l.b16 %v83
    %v342 = vunpack.c.h.b16 %v83
    %v343 = vunpack.c.l.b16 %v84
    %v344 = vunpack.c.h.b16 %v84
    %v345 = vunpack.c.l.b16 %v85
    %v346 = vunpack.c.h.b16 %v85
    %v347 = vunpack.c.l.b16 %v86
    %v348 = vunpack.c.h.b16 %v86
    %v349 = vunpack.c.l.b16 %v87
    %v350 = vunpack.c.h.b16 %v87
    %v351 = vunpack.c.l.b16 %v88
    %v352 = vunpack.c.h.b16 %v88
    %v353 = vunpack.c.l.b16 %v89
    %v354 = vunpack.c.h.b16 %v89
    %v355 = vunpack.c.l.b16 %v90
    %v356 = vunpack.c.h.b16 %v90
    %v357 = vunpack.c.l.b16 %v91
    %v358 = vunpack.c.h.b16 %v91
    %v359 = vunpack.c.l.b16 %v92
    %v360 = vunpack.c.h.b16 %v92
    %v361 = vunpack.c.l.b16 %v93
    %v362 = vunpack.c.h.b16 %v93
    %v363 = vunpack.c.l.b16 %v94
    %v364 = vunpack.c.h.b16 %v94
    %v365 = vunpack.c.l.b16 %v95
    %v366 = vunpack.c.h.b16 %v95
    %v367 = vunpack.c.l.b16 %v96
    %v368 = vunpack.c.h.b16 %v96
    %v369 = vunpack.c.l.b16 %v97
    %v370 = vunpack.c.h.b16 %v97
    %v371 = vunpack.c.l.b16 %v98
    %v372 = vunpack.c.h.b16 %v98
    %v373 = vunpack.c.l.b16 %v99
    %v374 = vunpack.c.h.b16 %v99
    %v375 = vunpack.c.l.b16 %v100
    %v376 = vunpack.c.h.b16 %v100
    %v377 = vunpack.c.l.b16 %v101
    %v378 = vunpack.c.h.b16 %v101
    %v379 = vunpack.c.l.b16 %v102
    %v380 = vunpack.c.h.b16 %v102
    %v381 = vunpack.c.l.b16 %v103
    %v382 = vunpack.c.h.b16 %v103
    %v383 = vunpack.c.l.b16 %v104
    %v384 = vunpack.c.h.b16 %v104
    %v385 = vunpack.c.l.b16 %v105
    %v386 = vunpack.c.h.b16 %v105
    %v387 = vunpack.c.l.b16 %v106
    %v388 = vunpack.c.h.b16 %v106
    %v389 = vunpack.c.l.b16 %v107
    %v390 = vunpack.c.h.b16 %v107
    %v391 = vunpack.c.l.b16 %v108
    %v392 = vunpack.c.h.b16 %v108
    %v393 = vunpack.c.l.b16 %v109
    %v394 = vunpack.c.h.b16 %v109
    %v395 = vunpack.c.l.b16 %v110
    %v396 = vunpack.c.h.b16 %v110
    %v397 = vunpack.c.l.b16 %v111
    %v398 = vunpack.c.h.b16 %v111
    %v399 = vunpack.c.l.b16 %v112
    %v400 = vunpack.c.h.b16 %v112
    %v401 = vunpack.c.l.b16 %v113
    %v402 = vunpack.c.h.b16 %v113
    %v403 = vunpack.c.l.b16 %v114
    %v404 = vunpack.c.h.b16 %v114
    %v405 = vunpack.c.l.b16 %v115
    %v406 = vunpack.c.h.b16 %v115
    %v407 = vunpack.c.l.b16 %v116
    %v408 = vunpack.c.h.b16 %v116
    %v409 = vunpack.c.l.b16 %v117
    %v410 = vunpack.c.h.b16 %v117
    %v411 = vunpack.c.l.b16 %v118
    %v412 = vunpack.c.h.b16 %v118
    %v413 = vunpack.c.l.b16 %v119
    %v414 = vunpack.c.h.b16 %v119
    %v415 = vunpack.c.l.b16 %v120
    %v416 = vunpack.c.h.b16 %v120
    %v417 = vunpack.c.l.b16 %v121
    %v418 = vunpack.c.h.b16 %v121
    %v419 = vunpack.c.l.b16 %v122
    %v420 = vunpack.c.h.b16 %v122
    %v421 = vunpack.c.l.b16 %v123
    %v422 = vunpack.c.h.b16 %v123
    %v423 = vunpack.c.l.b16 %v124
    %v424 = vunpack.c.h.b16 %v124
    %v425 = vunpack.c.l.b16 %v125
    %v426 = vunpack.c.h.b16 %v125
    %v427 = vunpack.c.l.b16 %v126
    %v428 = vunpack.c.h.b16 %v126
    %v429 = vunpack.c.l.b16 %v127
    %v430 = vunpack.c.h.b16 %v127
    %v431 = vunpack.c.l.b16 %v128
    %v432 = vunpack.c.h.b16 %v128
    %v433 = vunpack.c.l.b16 %v129
    %v434 = vunpack.c.h.b16 %v129
    %v435 = vunpack.c.l.b16 %v130
    %v436 = vunpack.c.h.b16 %v130
    %v437 = vunpack.c.l.b16 %v131
    %v438 = vunpack.c.h.b16 %v131
    %v439 = vunpack.c.l.b16 %v132
    %v440 = vunpack.c.h.b16 %v132
    %v441 = vunpack.c.l.b16 %v133
    %v442 = vunpack.c.h.b16 %v133
    %v443 = vunpack.c.l.b16 %v134
    %v444 = vunpack.c.h.b16 %v134
    %v445 = vunpack.c.l.b16 %v135
    %v446 = vunpack.c.h.b16 %v135
    %v447 = vunpack.c.l.b16 %v136
    %v448 = vunpack.c.h.b16 %v136
    %v449 = vunpack.c.l.b16 %v137
    %v450 = vunpack.c.h.b16 %v137
    %v451 = vunpack.c.l.b16 %v138
    %v452 = vunpack.c.h.b16 %v138
    %v453 = vunpack.c.l.b16 %v139
    %v454 = vunpack.c.h.b16 %v139
    %v455 = vunpack.c.l.b16 %v140
    %v456 = vunpack.c.h.b16 %v140
    %v457 = vunpack.c.l.b16 %v141
    %v458 = vunpack.c.h.b16 %v141
    %v459 = vunpack.c.l.b16 %v142
    %v460 = vunpack.c.h.b16 %v142
    %v461 = vunpack.c.l.b16 %v143
    %v462 = vunpack.c.h.b16 %v143
    %v463 = vunpack.c.l.b16 %v144
    %v464 = vunpack.c.h.b16 %v144
    %v465 = vunpack.c.l.b16 %v145
    %v466 = vunpack.c.h.b16 %v145
    %v467 = vunpack.c.l.b16 %v146
    %v468 = vunpack.c.h.b16 %v146
    %v469 = vunpack.c.l.b16 %v147
    %v470 = vunpack.c.h.b16 %v147
    %v471 = vunpack.c.l.b16 %v148
    %v472 = vunpack.c.h.b16 %v148
    %v473 = vpack.c.b16 %v279, %v277
    %v474 = vpack.c.b16 %v280, %v278
    %v475 = vpack.c.b16 %v283, %v281
    %v476 = vpack.c.b16 %v284, %v282
    %v477 = vpack.c.b16 %v287, %v285
    %v478 = vpack.c.b16 %v288, %v286
    %v479 = vpack.c.b16 %v291, %v289
    %v480 = vpack.c.b16 %v292, %v290
    %v481 = vpack.c.b16 %v295, %v293
    %v482 = vpack.c.b16 %v296, %v294
    %v483 = vpack.c.b16 %v299, %v297
    %v484 = vpack.c.b16 %v300, %v298
    %v485 = vpack.c.b16 %v303, %v301
    %v486 = vpack.c.b16 %v304, %v302
    %v487 = vpack.c.b16 %v307, %v305
    %v488 = vpack.c.b16 %v308, %v306
    %v489 = vpack.c.b16 %v311, %v309
    %v490 = vpack.c.b16 %v312, %v310
    %v491 = vpack.c.b16 %v315, %v313
    %v492 = vpack.c.b16 %v316, %v314
    %v493 = vpack.c.b16 %v319, %v317
    %v494 = vpack.c.b16 %v320, %v318
    %v495 = vpack.c.b16 %v323, %v321
    %v496 = vpack.c.b16 %v324, %v322
    %v497 = vpack.c.b16 %v327, %v325
    %v498 = vpack.c.b16 %v328, %v326
    %v499 = vpack.c.b16 %v331, %v329
    %v500 = vpack.c.b16 %v332, %v330
    %v501 = vpack.c.b16 %v335, %v333
    %v502 = vpack.c.b16 %v336, %v334
    %v503 = vpack.c.b16 %v339, %v337
    %v504 = vpack.c.b16 %v340, %v338
    %v505 = vpack.c.b16 %v343, %v341
    %v506 = vpack.c.b16 %v344, %v342
    %v507 = vpack.c.b16 %v347, %v345
    %v508 = vpack.c.b16 %v348, %v346
    %v509 = vpack.c.b16 %v351, %v349
    %v510 = vpack.c.b16 %v352, %v350
    %v511 = vpack.c.b16 %v355, %v353
    %v512 = vpack.c.b16 %v356, %v354
    %v513 = vpack.c.b16 %v359, %v357
    %v514 = vpack.c.b16 %v360, %v358
    %v515 = vpack.c.b16 %v363, %v361
    %v516 = vpack.c.b16 %v364, %v362
    %v517 = vpack.c.b16 %v367, %v365
    %v518 = vpack.c.b16 %v368, %v366
    %v519 = vpack.c.b16 %v371, %v369
    %v520 = vpack.c.b16 %v372, %v370
    %v521 = vpack.c.b16 %v375, %v373
    %v522 = vpack.c.b16 %v376, %v374
    %v523 = vpack.c.b16 %v379, %v377
    %v524 = vpack.c.b16 %v380, %v378
    %v525 = vpack.c.b16 %v383, %v381
    %v526 = vpack.c.b16 %v384, %v382
    %v527 = vpack.c.b16 %v387, %v385
    %v528 = vpack.c.b16 %v388, %v386
    %v529 = vpack.c.b16 %v391, %v389
    %v530 = vpack.c.b16 %v392, %v390
    %v531 = vpack.c.b16 %v395, %v393
    %v532 = vpack.c.b16 %v396, %v394
    %v533 = vpack.c.b16 %v399, %v397
    %v534 = vpack.c.b16 %v400, %v398
    %v535 = vpack.c.b16 %v403, %v401
    %v536 = vpack.c.b16 %v404, %v402
    %v537 = vpack.c.b16 %v407, %v405
    %v538 = vpack.c.b16 %v408, %v406
    %v539 = vpack.c.b16 %v411, %v409
    %v540 = vpack.c.b16 %v412, %v410
    %v541 = vpack.c.b16 %v415, %v413
    %v542 = vpack.c.b16 %v416, %v414
    %v543 = vpack.c.b16 %v419, %v417
    %v544 = vpack.c.b16 %v420, %v418
    %v545 = vpack.c.b16 %v423, %v421
    %v546 = vpack.c.b16 %v424, %v422
    %v547 = vpack.c.b16 %v427, %v425
    %v548 = vpack.c.b16 %v428, %v426
    %v549 = vpack.c.b16 %v431, %v429
    %v550 = vpack.c.b16 %v432, %v430
    %v551 = vpack.c.b16 %v435, %v433
    %v552 = vpack.c.b16 %v436, %v434
    %v553 = vpack.c.b16 %v439, %v437
    %v554 = vpack.c.b16 %v440, %v438
    %v555 = vpack.c.b16 %v443, %v441
    %v556 = vpack.c.b16 %v444, %v442
    %v557 = vpack.c.b16 %v447, %v445
    %v558 = vpack.c.b16 %v448, %v446
    %v559 = vpack.c.b16 %v451, %v449
    %v560 = vpack.c.b16 %v452, %v450
    %v561 = vpack.c.b16 %v455, %v453
    %v562 = vpack.c.b16 %v456, %v454
    %v563 = vpack.c.b16 %v459, %v457
    %v564 = vpack.c.b16 %v460, %v458
    %v565 = vpack.c.b16 %v463, %v461
    %v566 = vpack.c.b16 %v464, %v462
    %v567 = vpack.c.b16 %v467, %v465
    %v568 = vpack.c.b16 %v468, %v466
    %v569 = vpack.c.b16 %v471, %v469
    %v570 = vpack.c.b16 %v472, %v470
    %vm669 = vcmask 130048
    %v671 = vsel %vm669, %v172, 0
    %673 = vmatpush.bf16.msra.mxu0 %v487
    %674 = vmatpush.bf16.msra.mxu0 %v485
    %675 = vmatpush.bf16.msra.mxu0 %v483
    %676 = vmatpush.bf16.msra.mxu0 %v481
    %677 = vmatpush.bf16.msra.mxu0 %v479
    %678 = vmatpush.bf16.msra.mxu0 %v477
    %679 = vmatpush.bf16.msra.mxu0 %v475
    %680 = vmatpush.bf16.msra.mxu0 %v473
    %681 = vmatmul.bf16.gmra.mxu0 %v166
    %v682 = vpop.f32.mrf.mxu0
    %v683 = vadd.f32 %v151, %v682
    %v684 = vpop.f32.mrf.mxu0
    %685 = vdwg.mxu0
    %686 = vmatpush.bf16.msra.mxu0 %v503
    %687 = vmatpush.bf16.msra.mxu0 %v501
    %688 = vmatpush.bf16.msra.mxu0 %v499
    %689 = vmatpush.bf16.msra.mxu0 %v497
    %690 = vmatpush.bf16.msra.mxu0 %v495
    %691 = vmatpush.bf16.msra.mxu0 %v493
    %692 = vmatpush.bf16.msra.mxu0 %v491
    %693 = vmatpush.bf16.msra.mxu0 %v489
    %694 = vmatmul.bf16.gmra.mxu0 %v167
    %v695 = vpop.f32.mrf.mxu0
    %v696 = vadd.f32 %v683, %v695
    %v697 = vpop.f32.mrf.mxu0
    %698 = vdwg.mxu0
    %699 = vmatpush.bf16.msra.mxu0 %v519
    %700 = vmatpush.bf16.msra.mxu0 %v517
    %701 = vmatpush.bf16.msra.mxu0 %v515
    %702 = vmatpush.bf16.msra.mxu0 %v513
    %703 = vmatpush.bf16.msra.mxu0 %v511
    %704 = vmatpush.bf16.msra.mxu0 %v509
    %705 = vmatpush.bf16.msra.mxu0 %v507
    %706 = vmatpush.bf16.msra.mxu0 %v505
    %707 = vmatmul.bf16.gmra.mxu0 %v168
    %v708 = vpop.f32.mrf.mxu0
    %v709 = vadd.f32 %v696, %v708
    %v710 = vpop.f32.mrf.mxu0
    %711 = vdwg.mxu0
    %712 = vmatpush.bf16.msra.mxu0 %v535
    %713 = vmatpush.bf16.msra.mxu0 %v533
    %714 = vmatpush.bf16.msra.mxu0 %v531
    %715 = vmatpush.bf16.msra.mxu0 %v529
    %716 = vmatpush.bf16.msra.mxu0 %v527
    %717 = vmatpush.bf16.msra.mxu0 %v525
    %718 = vmatpush.bf16.msra.mxu0 %v523
    %719 = vmatpush.bf16.msra.mxu0 %v521
    %720 = vmatmul.bf16.gmra.mxu0 %v169
    %v721 = vpop.f32.mrf.mxu0
    %v722 = vadd.f32 %v709, %v721
    %v723 = vpop.f32.mrf.mxu0
    %724 = vdwg.mxu0
    %725 = vmatpush.bf16.msra.mxu0 %v551
    %726 = vmatpush.bf16.msra.mxu0 %v549
    %727 = vmatpush.bf16.msra.mxu0 %v547
    %728 = vmatpush.bf16.msra.mxu0 %v545
    %729 = vmatpush.bf16.msra.mxu0 %v543
    %730 = vmatpush.bf16.msra.mxu0 %v541
    %731 = vmatpush.bf16.msra.mxu0 %v539
    %732 = vmatpush.bf16.msra.mxu0 %v537
    %733 = vmatmul.bf16.gmra.mxu0 %v170
    %v734 = vpop.f32.mrf.mxu0
    %v735 = vadd.f32 %v722, %v734
    %v736 = vpop.f32.mrf.mxu0
    %737 = vdwg.mxu0
    %738 = vmatpush.bf16.msra.mxu0 %v567
    %739 = vmatpush.bf16.msra.mxu0 %v565
    %740 = vmatpush.bf16.msra.mxu0 %v563
    %741 = vmatpush.bf16.msra.mxu0 %v561
    %742 = vmatpush.bf16.msra.mxu0 %v559
    %743 = vmatpush.bf16.msra.mxu0 %v557
    %744 = vmatpush.bf16.msra.mxu0 %v555
    %745 = vmatpush.bf16.msra.mxu0 %v553
    %746 = vmatmul.bf16.gmra.mxu0 %v171
    %v747 = vpop.f32.mrf.mxu0
    %v748 = vadd.f32 %v735, %v747
    %v749 = vpop.f32.mrf.mxu0
    %750 = vdwg.mxu0
    %751 = vmatpush.bf16.msra.mxu0 0
    %752 = vmatpush.bf16.msra.mxu0 0
    %753 = vmatpush.bf16.msra.mxu0 0
    %754 = vmatpush.bf16.msra.mxu0 0
    %755 = vmatpush.bf16.msra.mxu0 0
    %756 = vmatpush.bf16.msra.mxu0 0
    %757 = vmatpush.bf16.msra.mxu0 0
    %758 = vmatpush.bf16.msra.mxu0 %v569
    %759 = vmatmul.bf16.gmra.mxu0 %v671
    %v760 = vpop.f32.mrf.mxu0
    %v761 = vadd.f32 %v748, %v760
    %v762 = vpop.f32.mrf.mxu0
    %763 = vdwg.mxu0
    %764 = vmatpush.bf16.msra.mxu0 %v488
    %765 = vmatpush.bf16.msra.mxu0 %v486
    %766 = vmatpush.bf16.msra.mxu0 %v484
    %767 = vmatpush.bf16.msra.mxu0 %v482
    %768 = vmatpush.bf16.msra.mxu0 %v480
    %769 = vmatpush.bf16.msra.mxu0 %v478
    %770 = vmatpush.bf16.msra.mxu0 %v476
    %771 = vmatpush.bf16.msra.mxu0 %v474
    %772 = vmatmul.bf16.gmra.mxu0 %v166
    %v773 = vpop.f32.mrf.mxu0
    %v774 = vadd.f32 %v152, %v773
    %v775 = vpop.f32.mrf.mxu0
    %776 = vdwg.mxu0
    %777 = vmatpush.bf16.msra.mxu0 %v504
    %778 = vmatpush.bf16.msra.mxu0 %v502
    %779 = vmatpush.bf16.msra.mxu0 %v500
    %780 = vmatpush.bf16.msra.mxu0 %v498
    %781 = vmatpush.bf16.msra.mxu0 %v496
    %782 = vmatpush.bf16.msra.mxu0 %v494
    %783 = vmatpush.bf16.msra.mxu0 %v492
    %784 = vmatpush.bf16.msra.mxu0 %v490
    %785 = vmatmul.bf16.gmra.mxu0 %v167
    %v786 = vpop.f32.mrf.mxu0
    %v787 = vadd.f32 %v774, %v786
    %v788 = vpop.f32.mrf.mxu0
    %789 = vdwg.mxu0
    %790 = vmatpush.bf16.msra.mxu0 %v520
    %791 = vmatpush.bf16.msra.mxu0 %v518
    %792 = vmatpush.bf16.msra.mxu0 %v516
    %793 = vmatpush.bf16.msra.mxu0 %v514
    %794 = vmatpush.bf16.msra.mxu0 %v512
    %795 = vmatpush.bf16.msra.mxu0 %v510
    %796 = vmatpush.bf16.msra.mxu0 %v508
    %797 = vmatpush.bf16.msra.mxu0 %v506
    %798 = vmatmul.bf16.gmra.mxu0 %v168
    %v799 = vpop.f32.mrf.mxu0
    %v800 = vadd.f32 %v787, %v799
    %v801 = vpop.f32.mrf.mxu0
    %802 = vdwg.mxu0
    %803 = vmatpush.bf16.msra.mxu0 %v536
    %804 = vmatpush.bf16.msra.mxu0 %v534
    %805 = vmatpush.bf16.msra.mxu0 %v532
    %806 = vmatpush.bf16.msra.mxu0 %v530
    %807 = vmatpush.bf16.msra.mxu0 %v528
    %808 = vmatpush.bf16.msra.mxu0 %v526
    %809 = vmatpush.bf16.msra.mxu0 %v524
    %810 = vmatpush.bf16.msra.mxu0 %v522
    %811 = vmatmul.bf16.gmra.mxu0 %v169
    %v812 = vpop.f32.mrf.mxu0
    %v813 = vadd.f32 %v800, %v812
    %v814 = vpop.f32.mrf.mxu0
    %815 = vdwg.mxu0
    %816 = vmatpush.bf16.msra.mxu0 %v552
    %817 = vmatpush.bf16.msra.mxu0 %v550
    %818 = vmatpush.bf16.msra.mxu0 %v548
    %819 = vmatpush.bf16.msra.mxu0 %v546
    %820 = vmatpush.bf16.msra.mxu0 %v544
    %821 = vmatpush.bf16.msra.mxu0 %v542
    %822 = vmatpush.bf16.msra.mxu0 %v540
    %823 = vmatpush.bf16.msra.mxu0 %v538
    %824 = vmatmul.bf16.gmra.mxu0 %v170
    %v825 = vpop.f32.mrf.mxu0
    %v826 = vadd.f32 %v813, %v825
    %v827 = vpop.f32.mrf.mxu0
    %828 = vdwg.mxu0
    %829 = vmatpush.bf16.msra.mxu0 %v568
    %830 = vmatpush.bf16.msra.mxu0 %v566
    %831 = vmatpush.bf16.msra.mxu0 %v564
    %832 = vmatpush.bf16.msra.mxu0 %v562
    %833 = vmatpush.bf16.msra.mxu0 %v560
    %834 = vmatpush.bf16.msra.mxu0 %v558
    %835 = vmatpush.bf16.msra.mxu0 %v556
    %836 = vmatpush.bf16.msra.mxu0 %v554
    %837 = vmatmul.bf16.gmra.mxu0 %v171
    %v838 = vpop.f32.mrf.mxu0
    %v839 = vadd.f32 %v826, %v838
    %v840 = vpop.f32.mrf.mxu0
    %841 = vdwg.mxu0
    %842 = vmatpush.bf16.msra.mxu0 0
    %843 = vmatpush.bf16.msra.mxu0 0
    %844 = vmatpush.bf16.msra.mxu0 0
    %845 = vmatpush.bf16.msra.mxu0 0
    %846 = vmatpush.bf16.msra.mxu0 0
    %847 = vmatpush.bf16.msra.mxu0 0
    %848 = vmatpush.bf16.msra.mxu0 0
    %849 = vmatpush.bf16.msra.mxu0 %v570
    %850 = vmatmul.bf16.gmra.mxu0 %v671
    %v851 = vpop.f32.mrf.mxu0
    %v852 = vadd.f32 %v839, %v851
    %v853 = vpop.f32.mrf.mxu0
    %854 = vdwg.mxu0
    %v855 = vmax.f32 %v761, 0.0
    %v856 = vmax.f32 %v852, 0.0
    %v857 = vpack.c.bf16 %v855, %v855
    %v858 = vpack.c.bf16 %v856, %v856
    %v859 = vld [vmem:[%s4] sm:$0xf]
    %v860 = vld [vmem:[%s4 + $0x4] sm:$0xf]
    %v861 = vld [vmem:[%s4 + $0x8] sm:$0xf]
    %v862 = vld [vmem:[%s4 + $0xc] sm:$0xf]
    %v863 = vld [vmem:[%s4 + $0x10] sm:$0xf]
    %v864 = vld [vmem:[%s4 + $0x14] sm:$0xf]
    %v865 = vld [vmem:[%s4 + $0x18] sm:$0xf]
    %v866 = vld [vmem:[%s4 + $0x1c] sm:$0xf]
    %v867 = vld [vmem:[%s4 + $0x20] sm:$0xf]
    %v868 = vld [vmem:[%s4 + $0x24] sm:$0xf]
    %v869 = vld [vmem:[%s4 + $0x28] sm:$0xf]
    %v870 = vld [vmem:[%s4 + $0x2c] sm:$0xf]
    %v871 = vld [vmem:[%s4 + $0x30] sm:$0xf]
    %v872 = vld [vmem:[%s4 + $0x34] sm:$0xf]
    %v873 = vld [vmem:[%s4 + $0x38] sm:$0xf]
    %v874 = vld [vmem:[%s4 + $0x3c] sm:$0xf]
    %v875 = vld [vmem:[%s4 + $0x40] sm:$0xf]
    %v876 = vld [vmem:[%s4 + $0x44] sm:$0xf]
    %v877 = vld [vmem:[%s4 + $0x48] sm:$0xf]
    %v878 = vld [vmem:[%s4 + $0x4c] sm:$0xf]
    %v879 = vld [vmem:[%s4 + $0x50] sm:$0xf]
    %v880 = vld [vmem:[%s4 + $0x54] sm:$0xf]
    %v881 = vld [vmem:[%s4 + $0x58] sm:$0xf]
    %v882 = vld [vmem:[%s4 + $0x5c] sm:$0xf]
    %v883 = vld [vmem:[%s4 + $0x60] sm:$0xf]
    %v884 = vld [vmem:[%s4 + $0x64] sm:$0xf]
    %v885 = vld [vmem:[%s4 + $0x68] sm:$0xf]
    %v886 = vld [vmem:[%s4 + $0x6c] sm:$0xf]
    %v887 = vld [vmem:[%s4 + $0x70] sm:$0xf]
    %v888 = vld [vmem:[%s4 + $0x74] sm:$0xf]
    %v889 = vld [vmem:[%s4 + $0x78] sm:$0xf]
    %v890 = vld [vmem:[%s4 + $0x7c] sm:$0xf]
    %v891 = vld [vmem:[%s5] sm:$0x1]
    %v893 = vperm.slane %v891, 0
    %v927 = vunpack.c.l.b16 %v859
    %v928 = vunpack.c.l.b16 %v860
    %v929 = vunpack.c.l.b16 %v861
    %v930 = vunpack.c.l.b16 %v862
    %v931 = vunpack.c.l.b16 %v863
    %v932 = vunpack.c.l.b16 %v864
    %v933 = vunpack.c.l.b16 %v865
    %v934 = vunpack.c.l.b16 %v866
    %v935 = vunpack.c.l.b16 %v867
    %v936 = vunpack.c.l.b16 %v868
    %v937 = vunpack.c.l.b16 %v869
    %v938 = vunpack.c.l.b16 %v870
    %v939 = vunpack.c.l.b16 %v871
    %v940 = vunpack.c.l.b16 %v872
    %v941 = vunpack.c.l.b16 %v873
    %v942 = vunpack.c.l.b16 %v874
    %v943 = vunpack.c.l.b16 %v875
    %v944 = vunpack.c.l.b16 %v876
    %v945 = vunpack.c.l.b16 %v877
    %v946 = vunpack.c.l.b16 %v878
    %v947 = vunpack.c.l.b16 %v879
    %v948 = vunpack.c.l.b16 %v880
    %v949 = vunpack.c.l.b16 %v881
    %v950 = vunpack.c.l.b16 %v882
    %v951 = vunpack.c.l.b16 %v883
    %v952 = vunpack.c.l.b16 %v884
    %v953 = vunpack.c.l.b16 %v885
    %v954 = vunpack.c.l.b16 %v886
    %v955 = vunpack.c.l.b16 %v887
    %v956 = vunpack.c.l.b16 %v888
    %v957 = vunpack.c.l.b16 %v889
    %v958 = vunpack.c.l.b16 %v890
    %v959 = vpack.c.b16 %v928, %v927
    %v960 = vpack.c.b16 %v930, %v929
    %v961 = vpack.c.b16 %v932, %v931
    %v962 = vpack.c.b16 %v934, %v933
    %v963 = vpack.c.b16 %v936, %v935
    %v964 = vpack.c.b16 %v938, %v937
    %v965 = vpack.c.b16 %v940, %v939
    %v966 = vpack.c.b16 %v942, %v941
    %v967 = vpack.c.b16 %v944, %v943
    %v968 = vpack.c.b16 %v946, %v945
    %v969 = vpack.c.b16 %v948, %v947
    %v970 = vpack.c.b16 %v950, %v949
    %v971 = vpack.c.b16 %v952, %v951
    %v972 = vpack.c.b16 %v954, %v953
    %v973 = vpack.c.b16 %v956, %v955
    %v974 = vpack.c.b16 %v958, %v957
    %991 = vmatpush.bf16.msra.mxu0 %v966
    %992 = vmatpush.bf16.msra.mxu0 %v965
    %993 = vmatpush.bf16.msra.mxu0 %v964
    %994 = vmatpush.bf16.msra.mxu0 %v963
    %995 = vmatpush.bf16.msra.mxu0 %v962
    %996 = vmatpush.bf16.msra.mxu0 %v961
    %997 = vmatpush.bf16.msra.mxu0 %v960
    %998 = vmatpush.bf16.msra.mxu0 %v959
    %999 = vmatmul.bf16.gmra.mxu0 %v857
    %v1000 = vpop.f32.mrf.mxu0
    %v1001 = vadd.f32 %v893, %v1000
    %v1002 = vpop.f32.mrf.mxu0
    %1003 = vdwg.mxu0
    %1004 = vmatpush.bf16.msra.mxu0 %v974
    %1005 = vmatpush.bf16.msra.mxu0 %v973
    %1006 = vmatpush.bf16.msra.mxu0 %v972
    %1007 = vmatpush.bf16.msra.mxu0 %v971
    %1008 = vmatpush.bf16.msra.mxu0 %v970
    %1009 = vmatpush.bf16.msra.mxu0 %v969
    %1010 = vmatpush.bf16.msra.mxu0 %v968
    %1011 = vmatpush.bf16.msra.mxu0 %v967
    %1012 = vmatmul.bf16.gmra.mxu0 %v858
    %v1013 = vpop.f32.mrf.mxu0
    %v1014 = vadd.f32 %v1001, %v1013
    %v1015 = vpop.f32.mrf.mxu0
    %1016 = vdwg.mxu0
    %v1017 = vmax.f32 %v1014, 0.0
    %v1018 = vpack.c.bf16 %v1017, %v1017
    %v1019 = vld [vmem:[%s6] sm:$0xf]
    %v1020 = vld [vmem:[%s6 + $0x4] sm:$0xf]
    %v1021 = vld [vmem:[%s6 + $0x8] sm:$0xf]
    %v1022 = vld [vmem:[%s6 + $0xc] sm:$0xf]
    %v1023 = vld [vmem:[%s6 + $0x10] sm:$0xf]
    %v1024 = vld [vmem:[%s6 + $0x14] sm:$0xf]
    %v1025 = vld [vmem:[%s6 + $0x18] sm:$0xf]
    %v1026 = vld [vmem:[%s6 + $0x1c] sm:$0xf]
    %v1027 = vld [vmem:[%s6 + $0x20] sm:$0xf]
    %v1028 = vld [vmem:[%s6 + $0x24] sm:$0xf]
    %v1029 = vld [vmem:[%s6 + $0x28] sm:$0xf]
    %v1030 = vld [vmem:[%s6 + $0x2c] sm:$0xf]
    %v1031 = vld [vmem:[%s6 + $0x30] sm:$0xf]
    %v1032 = vld [vmem:[%s6 + $0x34] sm:$0xf]
    %v1033 = vld [vmem:[%s6 + $0x38] sm:$0xf]
    %v1034 = vld [vmem:[%s6 + $0x3c] sm:$0xf]
    %v1035 = vld [vmem:[%s7] sm:$0x1]
    %v1037 = vperm.slane %v1035, 0
    %v1055 = vunpack.c.l.b16 %v1019
    %v1056 = vunpack.c.l.b16 %v1020
    %v1057 = vunpack.c.l.b16 %v1021
    %v1058 = vunpack.c.l.b16 %v1022
    %v1059 = vunpack.c.l.b16 %v1023
    %v1060 = vunpack.c.l.b16 %v1024
    %v1061 = vunpack.c.l.b16 %v1025
    %v1062 = vunpack.c.l.b16 %v1026
    %v1063 = vunpack.c.l.b16 %v1027
    %v1064 = vunpack.c.l.b16 %v1028
    %v1065 = vunpack.c.l.b16 %v1029
    %v1066 = vunpack.c.l.b16 %v1030
    %v1067 = vunpack.c.l.b16 %v1031
    %v1068 = vunpack.c.l.b16 %v1032
    %v1069 = vunpack.c.l.b16 %v1033
    %v1070 = vunpack.c.l.b16 %v1034
    %v1071 = vpack.c.b16 %v1056, %v1055
    %v1072 = vpack.c.b16 %v1058, %v1057
    %v1073 = vpack.c.b16 %v1060, %v1059
    %v1074 = vpack.c.b16 %v1062, %v1061
    %v1075 = vpack.c.b16 %v1064, %v1063
    %v1076 = vpack.c.b16 %v1066, %v1065
    %v1077 = vpack.c.b16 %v1068, %v1067
    %v1078 = vpack.c.b16 %v1070, %v1069
    %1087 = vmatpush.bf16.msra.mxu0 %v1078
    %1088 = vmatpush.bf16.msra.mxu0 %v1077
    %1089 = vmatpush.bf16.msra.mxu0 %v1076
    %1090 = vmatpush.bf16.msra.mxu0 %v1075
    %1091 = vmatpush.bf16.msra.mxu0 %v1074
    %1092 = vmatpush.bf16.msra.mxu0 %v1073
    %1093 = vmatpush.bf16.msra.mxu0 %v1072
    %1094 = vmatpush.bf16.msra.mxu0 %v1071
    %1095 = vmatmul.bf16.gmra.mxu0 %v1018
    %v1096 = vpop.f32.mrf.mxu0
    %v1097 = vadd.f32 %v1037, %v1096
    %v1098 = vpop.f32.mrf.mxu0
    %1099 = vdwg.mxu0
    %1100 = vst [vmem:[#allocation5] sm:$0xff] %v1097
    // Predicated region
    $region38: #{simple_nn_forward.1} parent=1 // pred_check
      _
    $region39: #{simple_nn_forward.1} parent=1 // pred_check_branch
      %1102 = sbr.rel (0) target = $region41
    $region40: #{simple_nn_forward.1} parent=1 // pred_region
      %1104 = vsyncadd [#allocation4], 0
      %s1106 = sshll.u32 [#allocation5], 4
      %s1107 = int_to_ptr.vmem [resolvable:$true] %s1106
      %s1108 = sshll.u32 %s8, 4
      %s1109 = int_to_ptr.hbm [resolvable:$true] %s1108
      %1111 = dma.vmem_to_hbm [thread:$0]  %s1107, 128, %s1109, [#allocation4]
    $region41: #{simple_nn_forward.1} parent=1 // pred_fallthru
      _
    // Predicated region
    $region42: #{simple_nn_forward.1} parent=1 // pred_check
      _
    $region43: #{simple_nn_forward.1} parent=1 // pred_check_branch
      %1113 = sbr.rel (0) target = $region45
    $region44: #{simple_nn_forward.1} parent=1 // pred_region
      %1115 = dma.done [#allocation4], 128
    $region45: #{simple_nn_forward.1} parent=1 // pred_fallthru
      _
    %1116 = vsyncpa [#allocation3], 1
    %1117 = vsyncpa [#allocation4], 1

</llo_original>
